<compile_context>
chip_gen: v7x
topology: tpu7x:2x2x1
jax: 0.10.0
libtpu: 0.0.40
codegen_flags: <defaults>
</compile_context>

<pallas_src>
import jax
import jax.numpy as jnp
from jax.experimental import pallas as pl
from jax.experimental.pallas import tpu as pltpu

N_INPUT = 9
D_RANK = 256
NC_RANK = 4
NC_PAD = 128          # lane-dense padded width of the final weight (zeros in extra cols)


def _round_up(n, m):
    return ((n + m - 1) // m) * m


def _xavier_normal(key, fan_out, fan_in):
    # matches torch.nn.init.xavier_normal_ on a (fan_out, fan_in) weight
    std = (2.0 / (fan_in + fan_out)) ** 0.5
    return std * jax.random.normal(key, (fan_out, fan_in), dtype=jnp.float32)


def _linear_default_bias(key, fan_in, fan_out):
    # matches torch.nn.Linear default bias init: U(-1/sqrt(fan_in), 1/sqrt(fan_in))
    bound = 1.0 / (fan_in ** 0.5)
    return jax.random.uniform(key, (1, fan_out), dtype=jnp.float32,
                              minval=-bound, maxval=bound)


def rank_mlp_kernel(x_ref,
                    w1_ref, b1_ref,
                    w2_ref, b2_ref,
                    w3_ref, b3_ref,
                    w4_ref, b4_ref,
                    o_ref):
    # Whole 4-layer MLP for one batch tile, fused in VMEM.
    # bf16 matmul operands, f32 accumulation, f32 bias/ReLU epilogue.
    x = x_ref[...].astype(jnp.bfloat16)
    h1 = jnp.maximum(
        jnp.dot(x, w1_ref[...], preferred_element_type=jnp.float32) + b1_ref[...], 0.0)
    h2 = jnp.maximum(
        jnp.dot(h1.astype(jnp.bfloat16), w2_ref[...],
                preferred_element_type=jnp.float32) + b2_ref[...], 0.0)
    h3 = jnp.maximum(
        jnp.dot(h2.astype(jnp.bfloat16), w3_ref[...],
                preferred_element_type=jnp.float32) + b3_ref[...], 0.0)
    logits = jnp.dot(h3.astype(jnp.bfloat16), w4_ref[...],
                     preferred_element_type=jnp.float32) + b4_ref[...]
    # Store only the 4 real logits: (tile, 4) block (4 == full array last dim), so the
    # HBM writeback is 16 B/row instead of a 512 B/row padded f32 slab.
    o_ref[...] = logits[:, :NC_RANK].astype(o_ref.dtype)


def rank_model_forward(x, params, *, batch_tile=2048):
    """x: (B, 9) float32. params: pre-transposed bf16 weights / f32 biases.

    Returns (B, 4) float32 logits. The batch is padded to a multiple of 8 and split
    into >= 2 grid steps whenever possible (keeps both v7x TensorCores busy); the tile
    is sized to ceil(padded_B / n_steps) so unlucky batch sizes don't waste a tile.
    """
    B = x.shape[0]
    Bp8 = _round_up(max(B, 1), 8)

    n_steps = pl.cdiv(Bp8, batch_tile)
    if Bp8 >= 16:                       # enough rows for two tiles of >= 8 rows
        n_steps = max(n_steps, 2)       # v7x: guarantee >= 2 steps for megacore sharding
    tile = _round_up(pl.cdiv(Bp8, n_steps), 8)
    Bp = tile * n_steps
    if Bp != B:
        x = jnp.pad(x, ((0, Bp - B), (0, 0)))

    w1, b1 = params["w1"], params["b1"]   # (9,   256) bf16, (1, 256) f32
    w2, b2 = params["w2"], params["b2"]   # (256, 256) bf16, (1, 256) f32
    w3, b3 = params["w3"], params["b3"]   # (256, 256) bf16, (1, 256) f32
    w4, b4 = params["w4"], params["b4"]   # (256, 128) bf16, (1, 128) f32 (lane-padded)

    def resident_spec(a):
        # Constant index_map => DMA'd once, stays resident across the whole grid.
        return pl.BlockSpec(a.shape, lambda i: (0, 0))

    # Advisory cost estimate so XLA overlaps the surrounding pad / slice with the kernel.
    flops = 2 * Bp * (N_INPUT * D_RANK + 2 * D_RANK * D_RANK + D_RANK * NC_PAD)
    weight_bytes = 2 * (w1.size + w2.size + w3.size + w4.size) \
        + 4 * (b1.size + b2.size + b3.size + b4.size)
    bytes_accessed = Bp * N_INPUT * 4 + Bp * NC_RANK * 4 + int(weight_bytes)
    cost = pl.CostEstimate(flops=int(flops), transcendentals=0,
                           bytes_accessed=int(bytes_accessed))

    out = pl.pallas_call(
        rank_mlp_kernel,
        out_shape=jax.ShapeDtypeStruct((Bp, NC_RANK), jnp.float32),
        grid_spec=pltpu.PrefetchScalarGridSpec(
            num_scalar_prefetch=0,
            grid=(n_steps,),
            in_specs=[
                pl.BlockSpec((tile, N_INPUT), lambda i: (i, 0)),
                resident_spec(w1), resident_spec(b1),
                resident_spec(w2), resident_spec(b2),
                resident_spec(w3), resident_spec(b3),
                resident_spec(w4), resident_spec(b4),
            ],
            out_specs=pl.BlockSpec((tile, NC_RANK), lambda i: (i, 0)),
        ),
        compiler_params=pltpu.CompilerParams(
            dimension_semantics=("parallel",),        # shard batch tiles across v7x TCs
            vmem_limit_bytes=48 * 1024 * 1024,        # tile=2048 intermediates + headroom
        ),
        cost_estimate=cost,
    )(x, w1, b1, w2, b2, w3, b3, w4, b4)

    return out[:B]


def init_rank_model_params(key):
    ks = jax.random.split(key, 8)
    # PyTorch Linear stores weight as (out, in); transpose to (in, out) for x @ W.
    w1 = _xavier_normal(ks[0], D_RANK, N_INPUT).T        # (9, 256)
    w2 = _xavier_normal(ks[1], D_RANK, D_RANK).T         # (256, 256)
    w3 = _xavier_normal(ks[2], D_RANK, D_RANK).T         # (256, 256)
    w4 = _xavier_normal(ks[3], NC_RANK, D_RANK).T        # (256, 4)
    b1 = _linear_default_bias(ks[4], N_INPUT, D_RANK)    # (1, 256)
    b2 = _linear_default_bias(ks[5], D_RANK, D_RANK)     # (1, 256)
    b3 = _linear_default_bias(ks[6], D_RANK, D_RANK)     # (1, 256)
    b4 = _linear_default_bias(ks[7], D_RANK, NC_RANK)    # (1, 4)
    # Lane-pad the final layer weight/bias to 128 output columns (zeros -> identical
    # logits); the kernel slices back to 4 columns before the store.
    w4 = jnp.pad(w4, ((0, 0), (0, NC_PAD - NC_RANK)))    # (256, 128)
    b4 = jnp.pad(b4, ((0, 0), (0, NC_PAD - NC_RANK)))    # (1, 128)
    return dict(
        w1=w1.astype(jnp.bfloat16), b1=b1,
        w2=w2.astype(jnp.bfloat16), b2=b2,
        w3=w3.astype(jnp.bfloat16), b3=b3,
        w4=w4.astype(jnp.bfloat16), b4=b4,
    )


def rank_model_reference(x, p):
    # Pure-JAX reference with the same bf16-operand / f32-accumulate recipe.
    xb = x.astype(jnp.bfloat16)
    h1 = jnp.maximum(jnp.dot(xb, p["w1"], preferred_element_type=jnp.float32) + p["b1"], 0.0)
    h2 = jnp.maximum(jnp.dot(h1.astype(jnp.bfloat16), p["w2"],
                             preferred_element_type=jnp.float32) + p["b2"], 0.0)
    h3 = jnp.maximum(jnp.dot(h2.astype(jnp.bfloat16), p["w3"],
                             preferred_element_type=jnp.float32) + p["b3"], 0.0)
    logits = jnp.dot(h3.astype(jnp.bfloat16), p["w4"],
                     preferred_element_type=jnp.float32) + p["b4"]
    return logits[:, :NC_RANK]


if __name__ == "__main__":
    key = jax.random.PRNGKey(0)
    pkey, xkey, xkey2 = jax.random.split(key, 3)
    params = init_rank_model_params(pkey)

    # Small deterministic input (exercises the small-tile / >=2-step grid path).
    batch = 12
    x = jax.random.normal(xkey, (batch, N_INPUT), dtype=jnp.float32)
    out = jax.block_until_ready(rank_model_forward(x, params))
    ref = rank_model_reference(x, params)
    assert out.shape == (batch, NC_RANK)
    assert jnp.allclose(out, ref, atol=2e-2, rtol=2e-2)

    # Larger batch just above a 2048 multiple: exercises the multi-tile parallel path
    # and the "no wasted padding tile" sizing (tile ~ 1368, 3 grid steps).
    batch2 = 4100
    x2 = jax.random.normal(xkey2, (batch2, N_INPUT), dtype=jnp.float32)
    out2 = jax.block_until_ready(rank_model_forward(x2, params))
    ref2 = rank_model_reference(x2, params)
    assert out2.shape == (batch2, NC_RANK)
    assert jnp.allclose(out2, ref2, atol=2e-2, rtol=2e-2)

    print("KERNEL_OK")
</pallas_src>

<mosaic_0001>
module attributes {stable_mosaic.version = 11 : i64} {
  func.func @rank_mlp_kernel(%arg0: i32, %arg1: memref<8x9xf32, #tpu.memory_space<vmem>>, %arg2: memref<9x256xbf16, #tpu.memory_space<vmem>>, %arg3: memref<1x256xf32, #tpu.memory_space<vmem>>, %arg4: memref<256x256xbf16, #tpu.memory_space<vmem>>, %arg5: memref<1x256xf32, #tpu.memory_space<vmem>>, %arg6: memref<256x256xbf16, #tpu.memory_space<vmem>>, %arg7: memref<1x256xf32, #tpu.memory_space<vmem>>, %arg8: memref<256x128xbf16, #tpu.memory_space<vmem>>, %arg9: memref<1x128xf32, #tpu.memory_space<vmem>>, %arg10: memref<8x4xf32, #tpu.memory_space<vmem>>) attributes {dimension_semantics = [#tpu.dimension_semantics<parallel>], iteration_bounds = array<i64: 2>, scalar_prefetch = 0 : i64, scratch_operands = 0 : i64, tpu.core_type = #tpu.core_type<tc>, window_params = [{transform_indices = @transform_0, window_bounds = array<i64: 8, 9>}, {pipeline_mode = #tpu.pipeline_mode<synchronous>, transform_indices = @transform_1, window_bounds = array<i64: 9, 256>}, {pipeline_mode = #tpu.pipeline_mode<synchronous>, transform_indices = @transform_2, window_bounds = array<i64: 1, 256>}, {pipeline_mode = #tpu.pipeline_mode<synchronous>, transform_indices = @transform_3, window_bounds = array<i64: 256, 256>}, {pipeline_mode = #tpu.pipeline_mode<synchronous>, transform_indices = @transform_4, window_bounds = array<i64: 1, 256>}, {pipeline_mode = #tpu.pipeline_mode<synchronous>, transform_indices = @transform_5, window_bounds = array<i64: 256, 256>}, {pipeline_mode = #tpu.pipeline_mode<synchronous>, transform_indices = @transform_6, window_bounds = array<i64: 1, 256>}, {pipeline_mode = #tpu.pipeline_mode<synchronous>, transform_indices = @transform_7, window_bounds = array<i64: 256, 128>}, {pipeline_mode = #tpu.pipeline_mode<synchronous>, transform_indices = @transform_8, window_bounds = array<i64: 1, 128>}, {transform_indices = @transform_9, window_bounds = array<i64: 8, 4>}]} {
    %c0 = arith.constant 0 : index
    %c0_0 = arith.constant 0 : index
    %0 = vector.load %arg1[%c0, %c0_0] : memref<8x9xf32, #tpu.memory_space<vmem>>, vector<8x9xf32>
    %1 = arith.truncf %0 : vector<8x9xf32> to vector<8x9xbf16>
    %c0_1 = arith.constant 0 : index
    %c0_2 = arith.constant 0 : index
    %2 = vector.load %arg2[%c0_1, %c0_2] : memref<9x256xbf16, #tpu.memory_space<vmem>>, vector<9x256xbf16>
    %cst = arith.constant dense<0.000000e+00> : vector<8x256xf32>
    %3 = tpu.matmul %1, %2, %cst {dimension_numbers = #tpu.dot_dimension_numbers<[1], [0], [0], [1], [0, 0, 1, 1], [], []>} : vector<8x9xbf16>, vector<9x256xbf16>, vector<8x256xf32> -> vector<8x256xf32>
    %c0_3 = arith.constant 0 : index
    %c0_4 = arith.constant 0 : index
    %4 = vector.load %arg3[%c0_3, %c0_4] : memref<1x256xf32, #tpu.memory_space<vmem>>, vector<1x256xf32>
    %5 = vector.broadcast %4 : vector<1x256xf32> to vector<8x256xf32>
    %6 = arith.addf %3, %5 : vector<8x256xf32>
    %cst_5 = arith.constant 0.000000e+00 : f32
    %7 = vector.broadcast %cst_5 : f32 to vector<8x256xf32>
    %8 = arith.maximumf %6, %7 : vector<8x256xf32>
    %9 = arith.truncf %8 : vector<8x256xf32> to vector<8x256xbf16>
    %c0_6 = arith.constant 0 : index
    %c0_7 = arith.constant 0 : index
    %10 = vector.load %arg4[%c0_6, %c0_7] : memref<256x256xbf16, #tpu.memory_space<vmem>>, vector<256x256xbf16>
    %cst_8 = arith.constant dense<0.000000e+00> : vector<8x256xf32>
    %11 = tpu.matmul %9, %10, %cst_8 {dimension_numbers = #tpu.dot_dimension_numbers<[1], [0], [0], [1], [0, 0, 1, 1], [], []>} : vector<8x256xbf16>, vector<256x256xbf16>, vector<8x256xf32> -> vector<8x256xf32>
    %c0_9 = arith.constant 0 : index
    %c0_10 = arith.constant 0 : index
    %12 = vector.load %arg5[%c0_9, %c0_10] : memref<1x256xf32, #tpu.memory_space<vmem>>, vector<1x256xf32>
    %13 = vector.broadcast %12 : vector<1x256xf32> to vector<8x256xf32>
    %14 = arith.addf %11, %13 : vector<8x256xf32>
    %cst_11 = arith.constant 0.000000e+00 : f32
    %15 = vector.broadcast %cst_11 : f32 to vector<8x256xf32>
    %16 = arith.maximumf %14, %15 : vector<8x256xf32>
    %17 = arith.truncf %16 : vector<8x256xf32> to vector<8x256xbf16>
    %c0_12 = arith.constant 0 : index
    %c0_13 = arith.constant 0 : index
    %18 = vector.load %arg6[%c0_12, %c0_13] : memref<256x256xbf16, #tpu.memory_space<vmem>>, vector<256x256xbf16>
    %cst_14 = arith.constant dense<0.000000e+00> : vector<8x256xf32>
    %19 = tpu.matmul %17, %18, %cst_14 {dimension_numbers = #tpu.dot_dimension_numbers<[1], [0], [0], [1], [0, 0, 1, 1], [], []>} : vector<8x256xbf16>, vector<256x256xbf16>, vector<8x256xf32> -> vector<8x256xf32>
    %c0_15 = arith.constant 0 : index
    %c0_16 = arith.constant 0 : index
    %20 = vector.load %arg7[%c0_15, %c0_16] : memref<1x256xf32, #tpu.memory_space<vmem>>, vector<1x256xf32>
    %21 = vector.broadcast %20 : vector<1x256xf32> to vector<8x256xf32>
    %22 = arith.addf %19, %21 : vector<8x256xf32>
    %cst_17 = arith.constant 0.000000e+00 : f32
    %23 = vector.broadcast %cst_17 : f32 to vector<8x256xf32>
    %24 = arith.maximumf %22, %23 : vector<8x256xf32>
    %25 = arith.truncf %24 : vector<8x256xf32> to vector<8x256xbf16>
    %c0_18 = arith.constant 0 : index
    %c0_19 = arith.constant 0 : index
    %26 = vector.load %arg8[%c0_18, %c0_19] : memref<256x128xbf16, #tpu.memory_space<vmem>>, vector<256x128xbf16>
    %cst_20 = arith.constant dense<0.000000e+00> : vector<8x128xf32>
    %27 = tpu.matmul %25, %26, %cst_20 {dimension_numbers = #tpu.dot_dimension_numbers<[1], [0], [0], [1], [0, 0, 1, 1], [], []>} : vector<8x256xbf16>, vector<256x128xbf16>, vector<8x128xf32> -> vector<8x128xf32>
    %c0_21 = arith.constant 0 : index
    %c0_22 = arith.constant 0 : index
    %28 = vector.load %arg9[%c0_21, %c0_22] : memref<1x128xf32, #tpu.memory_space<vmem>>, vector<1x128xf32>
    %29 = vector.broadcast %28 : vector<1x128xf32> to vector<8x128xf32>
    %30 = arith.addf %27, %29 : vector<8x128xf32>
    %31 = vector.extract_strided_slice %30 {offsets = [0, 0], sizes = [8, 4], strides = [1, 1]} : vector<8x128xf32> to vector<8x4xf32>
    %c0_23 = arith.constant 0 : index
    %c0_24 = arith.constant 0 : index
    %32 = vector.load %arg10[%c0_23, %c0_24] : memref<8x4xf32, #tpu.memory_space<vmem>>, vector<8x4xf32>
    tpu.vector_store %arg10[%c0_23, %c0_24], %31 {strides = array<i32>} : memref<8x4xf32, #tpu.memory_space<vmem>>, vector<8x4xf32>,
    return
  }
  func.func @transform_0(%arg0: i32) -> (i32, i32) {
    %c0_i32 = arith.constant 0 : i32
    %c0_i32_0 = arith.constant 0 : i32
    return %arg0, %c0_i32 : i32, i32
  }
  func.func @transform_1(%arg0: i32) -> (i32, i32) {
    %c0_i32 = arith.constant 0 : i32
    %c0_i32_0 = arith.constant 0 : i32
    %c0_i32_1 = arith.constant 0 : i32
    return %c0_i32, %c0_i32_0 : i32, i32
  }
  func.func @transform_2(%arg0: i32) -> (i32, i32) {
    %c0_i32 = arith.constant 0 : i32
    %c0_i32_0 = arith.constant 0 : i32
    %c0_i32_1 = arith.constant 0 : i32
    return %c0_i32, %c0_i32_0 : i32, i32
  }
  func.func @transform_3(%arg0: i32) -> (i32, i32) {
    %c0_i32 = arith.constant 0 : i32
    %c0_i32_0 = arith.constant 0 : i32
    %c0_i32_1 = arith.constant 0 : i32
    return %c0_i32, %c0_i32_0 : i32, i32
  }
  func.func @transform_4(%arg0: i32) -> (i32, i32) {
    %c0_i32 = arith.constant 0 : i32
    %c0_i32_0 = arith.constant 0 : i32
    %c0_i32_1 = arith.constant 0 : i32
    return %c0_i32, %c0_i32_0 : i32, i32
  }
  func.func @transform_5(%arg0: i32) -> (i32, i32) {
    %c0_i32 = arith.constant 0 : i32
    %c0_i32_0 = arith.constant 0 : i32
    %c0_i32_1 = arith.constant 0 : i32
    return %c0_i32, %c0_i32_0 : i32, i32
  }
  func.func @transform_6(%arg0: i32) -> (i32, i32) {
    %c0_i32 = arith.constant 0 : i32
    %c0_i32_0 = arith.constant 0 : i32
    %c0_i32_1 = arith.constant 0 : i32
    return %c0_i32, %c0_i32_0 : i32, i32
  }
  func.func @transform_7(%arg0: i32) -> (i32, i32) {
    %c0_i32 = arith.constant 0 : i32
    %c0_i32_0 = arith.constant 0 : i32
    %c0_i32_1 = arith.constant 0 : i32
    return %c0_i32, %c0_i32_0 : i32, i32
  }
  func.func @transform_8(%arg0: i32) -> (i32, i32) {
    %c0_i32 = arith.constant 0 : i32
    %c0_i32_0 = arith.constant 0 : i32
    %c0_i32_1 = arith.constant 0 : i32
    return %c0_i32, %c0_i32_0 : i32, i32
  }
  func.func @transform_9(%arg0: i32) -> (i32, i32) {
    %c0_i32 = arith.constant 0 : i32
    %c0_i32_0 = arith.constant 0 : i32
    return %arg0, %c0_i32 : i32, i32
  }
}

</mosaic_0001>

<llo_original>
// kernel: tpu_custom_call.1
$region0: #{tpu_custom_call.1}
  #allocation0 [shape = 'u32[]', space=smem, size = 0x4, offset = 0x4, fixed_abs, tag = 'smem constant byte address 0x4 - core index']
  #allocation1 [shape = 'u32[144,128]{1,0:T(1,128)}', space=vmem, size = 0x12000, scoped, tag = 'internal scratch']
  %s0 = inlined_call_operand.hbm [shape: f32[16,9], index: 0, kind: input, shape index: {}]
  %s1 = inlined_call_operand.hbm [shape: bf16[9,256], index: 1, kind: input, shape index: {}]
  %s2 = inlined_call_operand.vmem [shape: f32[1,256], index: 2, kind: input, shape index: {}]
  %s3 = inlined_call_operand.hbm [shape: bf16[256,256], index: 3, kind: input, shape index: {}]
  %s4 = inlined_call_operand.vmem [shape: f32[1,256], index: 4, kind: input, shape index: {}]
  %s5 = inlined_call_operand.hbm [shape: bf16[256,256], index: 5, kind: input, shape index: {}]
  %s6 = inlined_call_operand.vmem [shape: f32[1,256], index: 6, kind: input, shape index: {}]
  %s7 = inlined_call_operand.hbm [shape: bf16[256,128], index: 7, kind: input, shape index: {}]
  %s8 = inlined_call_operand.vmem [shape: f32[1,128], index: 8, kind: input, shape index: {}]
  %s9 = inlined_call_operand.vmem [shape: f32[16,4], index: 9, kind: output, shape index: {}]
  %s10 = sld [smem:[#allocation0]]
  $region89: #{tpu_custom_call.1} parent=0
    _
  %s12 = ssub.s32 1, %s10
  %s13 = scalar_select 0, %s12, %s10
  $region1: #{tpu_custom_call.1} parent=0
    #allocation2 [shape = 'u8[8192]{0}', space=vmem, size = 0x2000, scoped, tag = 'input window, operand 0']
    #allocation3 [shape = 's32[2]{0}', space=sflag, size = 0x8, scoped, tag = 'scoped memory for tpu_custom_call.1']
    #allocation4 [shape = 'u8[8192]{0}', space=vmem, size = 0x2000, scoped, tag = 'input window, operand 1, single buffered']
    #allocation5 [shape = 's32[1]{0}', space=sflag, size = 0x4, scoped, tag = 'scoped memory for tpu_custom_call.1']
    #allocation6 [shape = 'u8[131072]{0}', space=vmem, size = 0x20000, scoped, tag = 'input window, operand 3, single buffered']
    #allocation7 [shape = 'u8[131072]{0}', space=vmem, size = 0x20000, scoped, tag = 'input window, operand 5, single buffered']
    #allocation8 [shape = 's32[1]{0}', space=sflag, size = 0x4, scoped, tag = 'scoped memory for tpu_custom_call.1']
    #allocation9 [shape = 'u8[65536]{0}', space=vmem, size = 0x10000, scoped, tag = 'input window, operand 7, single buffered']
    %14 = vsyncpa [#allocation3], 0
    %s15 = scalar_lea.sflag [#allocation3], 1
    %16 = vsyncpa %s15, 0
    %17 = vsyncpa [#allocation5], 0
    %18 = vsyncpa [#allocation8], 0
    loop: start=0, step=1, limit=4
    $region2: #{tpu_custom_call.1} parent=1 // loop_pre_header
      _
    $region3: #{tpu_custom_call.1} parent=1 // loop_header
      %s20 = sphi 0, %s24
      %p21 = scmp.ge.s32.totalorder %s20, 4
      %s30 = sphi 0, %s32
      %s33 = sphi 0, %s30
      %s34 = sphi 0, %s33
      %s50 = sphi 0, %s34
      %s54 = sphi 0, %s54
      %s56 = sphi 0, %s54
      %s57 = sphi 0, %s56
      %s71 = sphi 0, %s57
      %s75 = sphi 0, %s75
      %s77 = sphi 0, %s75
      %s78 = sphi 0, %s77
      %s92 = sphi 0, %s78
      %s96 = sphi 0, %s96
      %s98 = sphi 0, %s96
      %s99 = sphi 0, %s98
      %s113 = sphi 0, %s99
      %s117 = sphi 0, %s117
      %s119 = sphi 0, %s117
      %s120 = sphi 0, %s119
      %s134 = sphi 0, %s120
      %s138 = sphi 0, %s138
      %s140 = sphi 0, %s138
      %s141 = sphi 0, %s140
      %s155 = sphi 0, %s141
      %s159 = sphi 0, %s159
      %s161 = sphi 0, %s159
      %s162 = sphi 0, %s161
      %s176 = sphi 0, %s162
      %s180 = sphi 0, %s180
      %s182 = sphi 0, %s180
      %s183 = sphi 0, %s182
      %s197 = sphi 0, %s183
      %s201 = sphi 0, %s201
      %s203 = sphi 0, %s201
      %s204 = sphi 0, %s203
      %s218 = sphi 0, %s204
      %s224 = sphi 0, %s226
      %s227 = sphi 0, %s224
      %s228 = sphi 0, %s227
      %s244 = sphi 0, %s228
    $region4: #{tpu_custom_call.1} parent=1 // loop_header_branch
      %23 = sbr.rel (%p21) target = $region8
    $region5: #{tpu_custom_call.1} parent=1 // loop_body
      %s25 = ssub.s32 %s20, 1
      %s26 = ssub.s32 %s20, 2
      %s27 = sadd.s32 %s20, 1
      %s28 = ssub.s32 %s20, %s27
      %p29 = scmp.eq.s32.totalorder %s28, 0
      %s31 = sadd.s32 %s30, 1
      %s32 = scalar_select %p29, %s30, %s31
      %p35 = pneg %p29
      %p36 = scmp.eq.s32.totalorder %s20, 1
      %p37 = por %p35, %p36
      %p38 = scmp.ne.s32.totalorder %s30, %s33
      %p39 = scmp.eq.s32.totalorder %s20, 0
      %p40 = por %p38, %p39
      %p41 = scmp.ne.s32.totalorder %s30, %s33
      %p42 = scmp.eq.s32.totalorder %s25, 1
      %p43 = por %p41, %p42
      %p44 = scmp.ne.s32.totalorder %s33, %s34
      %p45 = scmp.eq.s32.totalorder %s25, 0
      %p46 = por %p44, %p45
      %p47 = scmp.ne.s32.totalorder %s33, %s34
      %p48 = scmp.eq.s32.totalorder %s26, 1
      %p49 = por %p47, %p48
      %p51 = scmp.ne.s32.totalorder %s34, %s50
      %p52 = scmp.eq.s32.totalorder %s26, 0
      %p53 = por %p51, %p52
      %s55 = sadd.s32 %s54, 1
      %p58 = scmp.eq.s32.totalorder %s20, 1
      %p59 = scmp.ne.s32.totalorder %s54, %s56
      %p60 = scmp.eq.s32.totalorder %s20, 0
      %p61 = por %p59, %p60
      %p62 = scmp.ne.s32.totalorder %s54, %s56
      %p63 = scmp.eq.s32.totalorder %s25, 1
      %p64 = por %p62, %p63
      %p65 = scmp.ne.s32.totalorder %s56, %s57
      %p66 = scmp.eq.s32.totalorder %s25, 0
      %p67 = por %p65, %p66
      %p68 = scmp.ne.s32.totalorder %s56, %s57
      %p69 = scmp.eq.s32.totalorder %s26, 1
      %p70 = por %p68, %p69
      %p72 = scmp.ne.s32.totalorder %s57, %s71
      %p73 = scmp.eq.s32.totalorder %s26, 0
      %p74 = por %p72, %p73
      %s76 = sadd.s32 %s75, 1
      %p79 = scmp.eq.s32.totalorder %s20, 1
      %p80 = scmp.ne.s32.totalorder %s75, %s77
      %p81 = scmp.eq.s32.totalorder %s20, 0
      %p82 = por %p80, %p81
      %p83 = scmp.ne.s32.totalorder %s75, %s77
      %p84 = scmp.eq.s32.totalorder %s25, 1
      %p85 = por %p83, %p84
      %p86 = scmp.ne.s32.totalorder %s77, %s78
      %p87 = scmp.eq.s32.totalorder %s25, 0
      %p88 = por %p86, %p87
      %p89 = scmp.ne.s32.totalorder %s77, %s78
      %p90 = scmp.eq.s32.totalorder %s26, 1
      %p91 = por %p89, %p90
      %p93 = scmp.ne.s32.totalorder %s78, %s92
      %p94 = scmp.eq.s32.totalorder %s26, 0
      %p95 = por %p93, %p94
      %s97 = sadd.s32 %s96, 1
      %p100 = scmp.eq.s32.totalorder %s20, 1
      %p101 = scmp.ne.s32.totalorder %s96, %s98
      %p102 = scmp.eq.s32.totalorder %s20, 0
      %p103 = por %p101, %p102
      %p104 = scmp.ne.s32.totalorder %s96, %s98
      %p105 = scmp.eq.s32.totalorder %s25, 1
      %p106 = por %p104, %p105
      %p107 = scmp.ne.s32.totalorder %s98, %s99
      %p108 = scmp.eq.s32.totalorder %s25, 0
      %p109 = por %p107, %p108
      %p110 = scmp.ne.s32.totalorder %s98, %s99
      %p111 = scmp.eq.s32.totalorder %s26, 1
      %p112 = por %p110, %p111
      %p114 = scmp.ne.s32.totalorder %s99, %s113
      %p115 = scmp.eq.s32.totalorder %s26, 0
      %p116 = por %p114, %p115
      %s118 = sadd.s32 %s117, 1
      %p121 = scmp.eq.s32.totalorder %s20, 1
      %p122 = scmp.ne.s32.totalorder %s117, %s119
      %p123 = scmp.eq.s32.totalorder %s20, 0
      %p124 = por %p122, %p123
      %p125 = scmp.ne.s32.totalorder %s117, %s119
      %p126 = scmp.eq.s32.totalorder %s25, 1
      %p127 = por %p125, %p126
      %p128 = scmp.ne.s32.totalorder %s119, %s120
      %p129 = scmp.eq.s32.totalorder %s25, 0
      %p130 = por %p128, %p129
      %p131 = scmp.ne.s32.totalorder %s119, %s120
      %p132 = scmp.eq.s32.totalorder %s26, 1
      %p133 = por %p131, %p132
      %p135 = scmp.ne.s32.totalorder %s120, %s134
      %p136 = scmp.eq.s32.totalorder %s26, 0
      %p137 = por %p135, %p136
      %s139 = sadd.s32 %s138, 1
      %p142 = scmp.eq.s32.totalorder %s20, 1
      %p143 = scmp.ne.s32.totalorder %s138, %s140
      %p144 = scmp.eq.s32.totalorder %s20, 0
      %p145 = por %p143, %p144
      %p146 = scmp.ne.s32.totalorder %s138, %s140
      %p147 = scmp.eq.s32.totalorder %s25, 1
      %p148 = por %p146, %p147
      %p149 = scmp.ne.s32.totalorder %s140, %s141
      %p150 = scmp.eq.s32.totalorder %s25, 0
      %p151 = por %p149, %p150
      %p152 = scmp.ne.s32.totalorder %s140, %s141
      %p153 = scmp.eq.s32.totalorder %s26, 1
      %p154 = por %p152, %p153
      %p156 = scmp.ne.s32.totalorder %s141, %s155
      %p157 = scmp.eq.s32.totalorder %s26, 0
      %p158 = por %p156, %p157
      %s160 = sadd.s32 %s159, 1
      %p163 = scmp.eq.s32.totalorder %s20, 1
      %p164 = scmp.ne.s32.totalorder %s159, %s161
      %p165 = scmp.eq.s32.totalorder %s20, 0
      %p166 = por %p164, %p165
      %p167 = scmp.ne.s32.totalorder %s159, %s161
      %p168 = scmp.eq.s32.totalorder %s25, 1
      %p169 = por %p167, %p168
      %p170 = scmp.ne.s32.totalorder %s161, %s162
      %p171 = scmp.eq.s32.totalorder %s25, 0
      %p172 = por %p170, %p171
      %p173 = scmp.ne.s32.totalorder %s161, %s162
      %p174 = scmp.eq.s32.totalorder %s26, 1
      %p175 = por %p173, %p174
      %p177 = scmp.ne.s32.totalorder %s162, %s176
      %p178 = scmp.eq.s32.totalorder %s26, 0
      %p179 = por %p177, %p178
      %s181 = sadd.s32 %s180, 1
      %p184 = scmp.eq.s32.totalorder %s20, 1
      %p185 = scmp.ne.s32.totalorder %s180, %s182
      %p186 = scmp.eq.s32.totalorder %s20, 0
      %p187 = por %p185, %p186
      %p188 = scmp.ne.s32.totalorder %s180, %s182
      %p189 = scmp.eq.s32.totalorder %s25, 1
      %p190 = por %p188, %p189
      %p191 = scmp.ne.s32.totalorder %s182, %s183
      %p192 = scmp.eq.s32.totalorder %s25, 0
      %p193 = por %p191, %p192
      %p194 = scmp.ne.s32.totalorder %s182, %s183
      %p195 = scmp.eq.s32.totalorder %s26, 1
      %p196 = por %p194, %p195
      %p198 = scmp.ne.s32.totalorder %s183, %s197
      %p199 = scmp.eq.s32.totalorder %s26, 0
      %p200 = por %p198, %p199
      %s202 = sadd.s32 %s201, 1
      %p205 = scmp.eq.s32.totalorder %s20, 1
      %p206 = scmp.ne.s32.totalorder %s201, %s203
      %p207 = scmp.eq.s32.totalorder %s20, 0
      %p208 = por %p206, %p207
      %p209 = scmp.ne.s32.totalorder %s201, %s203
      %p210 = scmp.eq.s32.totalorder %s25, 1
      %p211 = por %p209, %p210
      %p212 = scmp.ne.s32.totalorder %s203, %s204
      %p213 = scmp.eq.s32.totalorder %s25, 0
      %p214 = por %p212, %p213
      %p215 = scmp.ne.s32.totalorder %s203, %s204
      %p216 = scmp.eq.s32.totalorder %s26, 1
      %p217 = por %p215, %p216
      %p219 = scmp.ne.s32.totalorder %s204, %s218
      %p220 = scmp.eq.s32.totalorder %s26, 0
      %p221 = por %p219, %p220
      %s222 = ssub.s32 %s20, %s27
      %p223 = scmp.eq.s32.totalorder %s222, 0
      %s225 = sadd.s32 %s224, 1
      %s226 = scalar_select %p223, %s224, %s225
      %p229 = pneg %p223
      %p230 = scmp.eq.s32.totalorder %s20, 1
      %p231 = por %p229, %p230
      %p232 = scmp.ne.s32.totalorder %s224, %s227
      %p233 = scmp.eq.s32.totalorder %s20, 0
      %p234 = por %p232, %p233
      %p235 = scmp.ne.s32.totalorder %s224, %s227
      %p236 = scmp.eq.s32.totalorder %s25, 1
      %p237 = por %p235, %p236
      %p238 = scmp.ne.s32.totalorder %s227, %s228
      %p239 = scmp.eq.s32.totalorder %s25, 0
      %p240 = por %p238, %p239
      %p241 = scmp.ne.s32.totalorder %s227, %s228
      %p242 = scmp.eq.s32.totalorder %s26, 1
      %p243 = por %p241, %p242
      %p245 = scmp.ne.s32.totalorder %s228, %s244
      %p246 = scmp.eq.s32.totalorder %s26, 0
      %p247 = por %p245, %p246
      %p248 = scmp.le.s32.totalorder 1, %s20
      %p249 = scmp.lt.s32.totalorder %s20, 3
      %p250 = pnand %p248, %p249
      %p251 = pneg %p250
      // Predicated region
      $region9: #{tpu_custom_call.1} parent=5 // pred_check
        _
      $region10: #{tpu_custom_call.1} parent=5 // pred_check_branch
        %253 = sbr.rel (%p250) target = $region12
      $region11: #{tpu_custom_call.1} parent=5 // pred_region
        %s254 = ssub.s32 %s20, 1
        // Predicated region
        $region13: #{tpu_custom_call.1} parent=11 // pred_check
          %p255 = pneg %p67
        $region14: #{tpu_custom_call.1} parent=11 // pred_check_branch
          %257 = sbr.rel (%p255) target = $region16
        $region15: #{tpu_custom_call.1} parent=11 // pred_region
          %s259 = ssub.s32 256, 256
          %260 = vsyncadd [#allocation5], %s259
          %s261 = sshll.u32 [#allocation4], 4
          %s262 = int_to_ptr.vmem [resolvable:$true] %s261
          %267 = dma.hbm_to_vmem [thread:$0]  %s1, 256, %s262, [#allocation5], 128, 128, 8
        $region16: #{tpu_custom_call.1} parent=11 // pred_fallthru
          _
        // Predicated region
        $region17: #{tpu_custom_call.1} parent=11 // pred_check
          %p268 = pneg %p88
        $region18: #{tpu_custom_call.1} parent=11 // pred_check_branch
          %270 = sbr.rel (%p268) target = $region20
        $region19: #{tpu_custom_call.1} parent=11 // pred_region
          _
        $region20: #{tpu_custom_call.1} parent=11 // pred_fallthru
          _
        // Predicated region
        $region21: #{tpu_custom_call.1} parent=11 // pred_check
          %p271 = pneg %p109
        $region22: #{tpu_custom_call.1} parent=11 // pred_check_branch
          %273 = sbr.rel (%p271) target = $region24
        $region23: #{tpu_custom_call.1} parent=11 // pred_region
          %s275 = ssub.s32 4096, 4096
          %276 = vsyncadd [#allocation5], %s275
          %s277 = sshll.u32 [#allocation6], 4
          %s278 = int_to_ptr.vmem [resolvable:$true] %s277
          %283 = dma.hbm_to_vmem [thread:$0]  %s3, 4096, %s278, [#allocation5], 128, 128, 8
        $region24: #{tpu_custom_call.1} parent=11 // pred_fallthru
          _
        // Predicated region
        $region25: #{tpu_custom_call.1} parent=11 // pred_check
          %p284 = pneg %p130
        $region26: #{tpu_custom_call.1} parent=11 // pred_check_branch
          %286 = sbr.rel (%p284) target = $region28
        $region27: #{tpu_custom_call.1} parent=11 // pred_region
          _
        $region28: #{tpu_custom_call.1} parent=11 // pred_fallthru
          _
        // Predicated region
        $region29: #{tpu_custom_call.1} parent=11 // pred_check
          %p287 = pneg %p151
        $region30: #{tpu_custom_call.1} parent=11 // pred_check_branch
          %289 = sbr.rel (%p287) target = $region32
        $region31: #{tpu_custom_call.1} parent=11 // pred_region
          %s291 = ssub.s32 4096, 4096
          %292 = vsyncadd [#allocation8], %s291
          %s293 = sshll.u32 [#allocation7], 4
          %s294 = int_to_ptr.vmem [resolvable:$true] %s293
          %299 = dma.hbm_to_vmem [thread:$0]  %s5, 4096, %s294, [#allocation8], 128, 128, 8
        $region32: #{tpu_custom_call.1} parent=11 // pred_fallthru
          _
        // Predicated region
        $region33: #{tpu_custom_call.1} parent=11 // pred_check
          %p300 = pneg %p172
        $region34: #{tpu_custom_call.1} parent=11 // pred_check_branch
          %302 = sbr.rel (%p300) target = $region36
        $region35: #{tpu_custom_call.1} parent=11 // pred_region
          _
        $region36: #{tpu_custom_call.1} parent=11 // pred_fallthru
          _
        // Predicated region
        $region37: #{tpu_custom_call.1} parent=11 // pred_check
          %p303 = pneg %p193
        $region38: #{tpu_custom_call.1} parent=11 // pred_check_branch
          %305 = sbr.rel (%p303) target = $region40
        $region39: #{tpu_custom_call.1} parent=11 // pred_region
          %s307 = ssub.s32 2048, 2048
          %308 = vsyncadd [#allocation8], %s307
          %s309 = sshll.u32 [#allocation9], 4
          %s310 = int_to_ptr.vmem [resolvable:$true] %s309
          %315 = dma.hbm_to_vmem [thread:$0]  %s7, 2048, %s310, [#allocation8], 64, 64, 4
        $region40: #{tpu_custom_call.1} parent=11 // pred_fallthru
          _
        // Predicated region
        $region41: #{tpu_custom_call.1} parent=11 // pred_check
          %p316 = pneg %p214
        $region42: #{tpu_custom_call.1} parent=11 // pred_check_branch
          %318 = sbr.rel (%p316) target = $region44
        $region43: #{tpu_custom_call.1} parent=11 // pred_region
          _
        $region44: #{tpu_custom_call.1} parent=11 // pred_fallthru
          _
      $region12: #{tpu_custom_call.1} parent=5 // pred_fallthru
        _
      %p319 = scmp.lt.s32.totalorder %s20, 2
      // Predicated region
      $region45: #{tpu_custom_call.1} parent=5 // pred_check
        %p320 = pneg %p319
      $region46: #{tpu_custom_call.1} parent=5 // pred_check_branch
        %322 = sbr.rel (%p320) target = $region48
      $region47: #{tpu_custom_call.1} parent=5 // pred_region
        // Predicated region
        $region49: #{tpu_custom_call.1} parent=47 // pred_check
          %p323 = pneg %p40
        $region50: #{tpu_custom_call.1} parent=47 // pred_check_branch
          %325 = sbr.rel (%p323) target = $region52
        $region51: #{tpu_custom_call.1} parent=47 // pred_region
          %s326 = sand.u32 %s30, 1
          %s327 = scalar_lea.sflag [#allocation3], %s326
          %s328 = sand.u32 %s30, 1
          %s329 = smul.addr %s328, 8
          %s330 = scalar_lea.vmem [#allocation2], %s329
          %s332 = ssub.s32 128, 128
          %333 = vsyncadd %s327, %s332
          %s334 = smul.addr %s20, 128
          %s335 = scalar_lea.hbm %s0, %s334
          %s337 = sshll.u32 %s330, 4
          %s338 = int_to_ptr.vmem [resolvable:$true] %s337
          %340 = dma.hbm_to_vmem [thread:$0]  %s335, 128, %s338, %s327
        $region52: #{tpu_custom_call.1} parent=47 // pred_fallthru
          _
      $region48: #{tpu_custom_call.1} parent=5 // pred_fallthru
        _
      %p341 = scmp.le.s32.totalorder 1, %s20
      %p342 = scmp.lt.s32.totalorder %s20, 3
      %p343 = pnand %p341, %p342
      %p344 = pneg %p343
      // Predicated region
      $region53: #{tpu_custom_call.1} parent=5 // pred_check
        _
      $region54: #{tpu_custom_call.1} parent=5 // pred_check_branch
        %346 = sbr.rel (%p343) target = $region56
      $region55: #{tpu_custom_call.1} parent=5 // pred_region
        %s347 = ssub.s32 %s20, 1
        %s348 = sand.u32 %s33, 1
        %s349 = scalar_lea.sflag [#allocation3], %s348
        %s350 = sand.u32 %s33, 1
        %s351 = smul.addr %s350, 8
        %s352 = scalar_lea.vmem [#allocation2], %s351
        // Predicated region
        $region57: #{tpu_custom_call.1} parent=55 // pred_check
          %p353 = pneg %p46
        $region58: #{tpu_custom_call.1} parent=55 // pred_check_branch
          %355 = sbr.rel (%p353) target = $region60
        $region59: #{tpu_custom_call.1} parent=55 // pred_region
          %356 = dma.done %s349, 128
        $region60: #{tpu_custom_call.1} parent=55 // pred_fallthru
          _
        // Predicated region
        $region61: #{tpu_custom_call.1} parent=55 // pred_check
          %p357 = pneg %p67
        $region62: #{tpu_custom_call.1} parent=55 // pred_check_branch
          %359 = sbr.rel (%p357) target = $region64
        $region63: #{tpu_custom_call.1} parent=55 // pred_region
          %360 = dma.done [#allocation5], 256
        $region64: #{tpu_custom_call.1} parent=55 // pred_fallthru
          _
        // Predicated region
        $region65: #{tpu_custom_call.1} parent=55 // pred_check
          %p361 = pneg %p109
        $region66: #{tpu_custom_call.1} parent=55 // pred_check_branch
          %363 = sbr.rel (%p361) target = $region68
        $region67: #{tpu_custom_call.1} parent=55 // pred_region
          %364 = dma.done [#allocation5], 4096
        $region68: #{tpu_custom_call.1} parent=55 // pred_fallthru
          _
        // Predicated region
        $region69: #{tpu_custom_call.1} parent=55 // pred_check
          %p365 = pneg %p151
        $region70: #{tpu_custom_call.1} parent=55 // pred_check_branch
          %367 = sbr.rel (%p365) target = $region72
        $region71: #{tpu_custom_call.1} parent=55 // pred_region
          %368 = dma.done [#allocation8], 4096
        $region72: #{tpu_custom_call.1} parent=55 // pred_fallthru
          _
        // Predicated region
        $region73: #{tpu_custom_call.1} parent=55 // pred_check
          %p369 = pneg %p193
        $region74: #{tpu_custom_call.1} parent=55 // pred_check_branch
          %371 = sbr.rel (%p369) target = $region76
        $region75: #{tpu_custom_call.1} parent=55 // pred_region
          %372 = dma.done [#allocation8], 2048
        $region76: #{tpu_custom_call.1} parent=55 // pred_fallthru
          _
        %s373 = sand.u32 %s33, 1
        %s374 = scalar_lea.sflag [#allocation3], %s373
        %s375 = sand.u32 %s33, 1
        %s376 = smul.addr %s375, 8
        %s377 = scalar_lea.vmem [#allocation2], %s376
        %p378 = pneg %p46
        %p379 = pneg %p43
        %p380 = pneg %p67
        %p381 = pneg %p64
        %p382 = pneg %p88
        %p383 = pneg %p85
        %p384 = pneg %p109
        %p385 = pneg %p106
        %p386 = pneg %p130
        %p387 = pneg %p127
        %p388 = pneg %p151
        %p389 = pneg %p148
        %p390 = pneg %p172
        %p391 = pneg %p169
        %p392 = pneg %p193
        %p393 = pneg %p190
        %p394 = pneg %p214
        %p395 = pneg %p211
        %p396 = pneg %p240
        %p397 = pneg %p237
        %p398 = scmp.lt.s32.totalorder %s25, 1
        %s399 = scalar_select %p398, %s25, 1
        %s400 = smul.addr %s399, 8
        %s401 = scalar_lea.vmem %s9, %s400
        %p402 = scmp.lt.s32.totalorder %s25, 1
        %s403 = scalar_select %p402, %s25, 1
        %s404 = smul.addr %s403, 8
        %s405 = scalar_lea.vmem %s9, %s404
        %v407 = vld [vmem:[%s352] sm:$0xff]
        %v408 = vpack.c.bf16 %v407, %v407
        %v409 = vld [vmem:[#allocation4] sm:$0xff]
        %v410 = vld [vmem:[#allocation4 + $0x8] sm:$0x11]
        %v411 = vld [vmem:[%s2] sm:$0x3]
        %v413 = vlaneseq
        %v414 = vshrl.u32 %v413, 7
        %v415 = vsub.s32 0, %v414
        %v416 = vrot.slane %v411, %v415
        %v417 = vlaneseq
        %v418 = vshrl.u32 %v417, 7
        %v419 = vsub.s32 1, %v418
        %v420 = vrot.slane %v411, %v419
        %v425 = vunpack.c.l.b16 %v409
        %v426 = vunpack.c.h.b16 %v409
        %v427 = vunpack.c.l.b16 %v410
        %v428 = vunpack.c.h.b16 %v410
        %v429 = vpack.c.b16 %v427, %v425
        %v430 = vpack.c.b16 %v428, %v426
        %vm431 = vcmask 72704
        %v433 = vsel %vm431, %v408, 0
        %vm435 = vcmask 1043456
        %vm436 = vcmask 1044480
        %v437 = vsel %vm435, 4294967295, 65535
        %v438 = vsel %vm436, %v437, 0
        %v440 = vand.u32 %v429, %v438
        %v443 = vand.u32 %v430, %v438
        %445 = vmatprep.subr.bf16.mxu0 %v443
        %446 = vmatpush1.bf16.msra.mxu0 %v440
        %447 = vmatprep.subr.bf16.mxu0 0
        %448 = vmatpush1.bf16.msra.mxu0 0
        %449 = vmatprep.subr.bf16.mxu0 0
        %450 = vmatpush1.bf16.msra.mxu0 0
        %451 = vmatprep.subr.bf16.mxu0 0
        %452 = vmatpush1.bf16.msra.mxu0 0
        %453 = vmatprep.subr.bf16.mxu0 0
        %454 = vmatpush1.bf16.msra.mxu0 0
        %455 = vmatprep.subr.bf16.mxu0 0
        %456 = vmatpush1.bf16.msra.mxu0 0
        %457 = vmatprep.subr.bf16.mxu0 0
        %458 = vmatpush1.bf16.msra.mxu0 0
        %459 = vmatprep.subr.bf16.mxu0 0
        %460 = vmatpush1.bf16.msra.mxu0 0
        %461 = vmatprep.subr.bf16.mxu0 0
        %462 = vmatpush1.bf16.msra.mxu0 0
        %463 = vmatprep.subr.bf16.mxu0 0
        %464 = vmatpush1.bf16.msra.mxu0 0
        %465 = vmatprep.subr.bf16.mxu0 0
        %466 = vmatpush1.bf16.msra.mxu0 0
        %467 = vmatprep.subr.bf16.mxu0 0
        %468 = vmatpush1.bf16.msra.mxu0 0
        %469 = vmatprep.subr.bf16.mxu0 0
        %470 = vmatpush1.bf16.msra.mxu0 0
        %471 = vmatprep.subr.bf16.mxu0 0
        %472 = vmatpush1.bf16.msra.mxu0 0
        %473 = vmatprep.subr.bf16.mxu0 0
        %474 = vmatpush1.bf16.msra.mxu0 0
        %475 = vmatprep.subr.bf16.mxu0 0
        %476 = vmatpush1.bf16.msra.mxu0 0
        %477 = vmatprep.mubr.bf16.mxu0 0
        %478 = vmatmul.mubr.bf16.gmra.mrb[0].mxu0 %v433
        %v479 = vpop.f32.mrb[0].mxu0
        %v480 = vadd.f32 %v416, %v479
        %v481 = vpop.f32.mrb[0].mxu0
        %v482 = vadd.f32 %v420, %v481
        %v483 = vpop.f32.mrb[0].mxu0
        %v484 = vpop.f32.mrb[0].mxu0
        %485 = vdwg.mxu0
        %v486 = vmax.f32 %v480, 0.0
        %v487 = vmax.f32 %v482, 0.0
        %v488 = vpack.c.bf16 %v486, %v486
        %v489 = vpack.c.bf16 %v487, %v487
        %v490 = vld [vmem:[#allocation6] sm:$0xff]
        %v491 = vld [vmem:[#allocation6 + $0x8] sm:$0xff]
        %v492 = vld [vmem:[#allocation6 + $0x10] sm:$0xff]
        %v493 = vld [vmem:[#allocation6 + $0x18] sm:$0xff]
        %v494 = vld [vmem:[#allocation6 + $0x20] sm:$0xff]
        %v495 = vld [vmem:[#allocation6 + $0x28] sm:$0xff]
        %v496 = vld [vmem:[#allocation6 + $0x30] sm:$0xff]
        %v497 = vld [vmem:[#allocation6 + $0x38] sm:$0xff]
        %v498 = vld [vmem:[#allocation6 + $0x40] sm:$0xff]
        %v499 = vld [vmem:[#allocation6 + $0x48] sm:$0xff]
        %v500 = vld [vmem:[#allocation6 + $0x50] sm:$0xff]
        %v501 = vld [vmem:[#allocation6 + $0x58] sm:$0xff]
        %v502 = vld [vmem:[#allocation6 + $0x60] sm:$0xff]
        %v503 = vld [vmem:[#allocation6 + $0x68] sm:$0xff]
        %v504 = vld [vmem:[#allocation6 + $0x70] sm:$0xff]
        %v505 = vld [vmem:[#allocation6 + $0x78] sm:$0xff]
        %v506 = vld [vmem:[#allocation6 + $0x80] sm:$0xff]
        %v507 = vld [vmem:[#allocation6 + $0x88] sm:$0xff]
        %v508 = vld [vmem:[#allocation6 + $0x90] sm:$0xff]
        %v509 = vld [vmem:[#allocation6 + $0x98] sm:$0xff]
        %v510 = vld [vmem:[#allocation6 + $0xa0] sm:$0xff]
        %v511 = vld [vmem:[#allocation6 + $0xa8] sm:$0xff]
        %v512 = vld [vmem:[#allocation6 + $0xb0] sm:$0xff]
        %v513 = vld [vmem:[#allocation6 + $0xb8] sm:$0xff]
        %v514 = vld [vmem:[#allocation6 + $0xc0] sm:$0xff]
        %v515 = vld [vmem:[#allocation6 + $0xc8] sm:$0xff]
        %v516 = vld [vmem:[#allocation6 + $0xd0] sm:$0xff]
        %v517 = vld [vmem:[#allocation6 + $0xd8] sm:$0xff]
        %v518 = vld [vmem:[#allocation6 + $0xe0] sm:$0xff]
        %v519 = vld [vmem:[#allocation6 + $0xe8] sm:$0xff]
        %v520 = vld [vmem:[#allocation6 + $0xf0] sm:$0xff]
        %v521 = vld [vmem:[#allocation6 + $0xf8] sm:$0xff]
        %v522 = vld [vmem:[%s4] sm:$0x3]
        %v524 = vlaneseq
        %v525 = vshrl.u32 %v524, 7
        %v526 = vsub.s32 0, %v525
        %v527 = vrot.slane %v522, %v526
        %v528 = vlaneseq
        %v529 = vshrl.u32 %v528, 7
        %v530 = vsub.s32 1, %v529
        %v531 = vrot.slane %v522, %v530
        %v566 = vunpack.c.l.b16 %v490
        %v567 = vunpack.c.h.b16 %v490
        %v568 = vunpack.c.l.b16 %v491
        %v569 = vunpack.c.h.b16 %v491
        %v570 = vunpack.c.l.b16 %v492
        %v571 = vunpack.c.h.b16 %v492
        %v572 = vunpack.c.l.b16 %v493
        %v573 = vunpack.c.h.b16 %v493
        %v574 = vunpack.c.l.b16 %v494
        %v575 = vunpack.c.h.b16 %v494
        %v576 = vunpack.c.l.b16 %v495
        %v577 = vunpack.c.h.b16 %v495
        %v578 = vunpack.c.l.b16 %v496
        %v579 = vunpack.c.h.b16 %v496
        %v580 = vunpack.c.l.b16 %v497
        %v581 = vunpack.c.h.b16 %v497
        %v582 = vunpack.c.l.b16 %v498
        %v583 = vunpack.c.h.b16 %v498
        %v584 = vunpack.c.l.b16 %v499
        %v585 = vunpack.c.h.b16 %v499
        %v586 = vunpack.c.l.b16 %v500
        %v587 = vunpack.c.h.b16 %v500
        %v588 = vunpack.c.l.b16 %v501
        %v589 = vunpack.c.h.b16 %v501
        %v590 = vunpack.c.l.b16 %v502
        %v591 = vunpack.c.h.b16 %v502
        %v592 = vunpack.c.l.b16 %v503
        %v593 = vunpack.c.h.b16 %v503
        %v594 = vunpack.c.l.b16 %v504
        %v595 = vunpack.c.h.b16 %v504
        %v596 = vunpack.c.l.b16 %v505
        %v597 = vunpack.c.h.b16 %v505
        %v598 = vunpack.c.l.b16 %v506
        %v599 = vunpack.c.h.b16 %v506
        %v600 = vunpack.c.l.b16 %v507
        %v601 = vunpack.c.h.b16 %v507
        %v602 = vunpack.c.l.b16 %v508
        %v603 = vunpack.c.h.b16 %v508
        %v604 = vunpack.c.l.b16 %v509
        %v605 = vunpack.c.h.b16 %v509
        %v606 = vunpack.c.l.b16 %v510
        %v607 = vunpack.c.h.b16 %v510
        %v608 = vunpack.c.l.b16 %v511
        %v609 = vunpack.c.h.b16 %v511
        %v610 = vunpack.c.l.b16 %v512
        %v611 = vunpack.c.h.b16 %v512
        %v612 = vunpack.c.l.b16 %v513
        %v613 = vunpack.c.h.b16 %v513
        %v614 = vunpack.c.l.b16 %v514
        %v615 = vunpack.c.h.b16 %v514
        %v616 = vunpack.c.l.b16 %v515
        %v617 = vunpack.c.h.b16 %v515
        %v618 = vunpack.c.l.b16 %v516
        %v619 = vunpack.c.h.b16 %v516
        %v620 = vunpack.c.l.b16 %v517
        %v621 = vunpack.c.h.b16 %v517
        %v622 = vunpack.c.l.b16 %v518
        %v623 = vunpack.c.h.b16 %v518
        %v624 = vunpack.c.l.b16 %v519
        %v625 = vunpack.c.h.b16 %v519
        %v626 = vunpack.c.l.b16 %v520
        %v627 = vunpack.c.h.b16 %v520
        %v628 = vunpack.c.l.b16 %v521
        %v629 = vunpack.c.h.b16 %v521
        %v630 = vpack.c.b16 %v568, %v566
        %v631 = vpack.c.b16 %v569, %v567
        %v632 = vpack.c.b16 %v572, %v570
        %v633 = vpack.c.b16 %v573, %v571
        %v634 = vpack.c.b16 %v576, %v574
        %v635 = vpack.c.b16 %v577, %v575
        %v636 = vpack.c.b16 %v580, %v578
        %v637 = vpack.c.b16 %v581, %v579
        %v638 = vpack.c.b16 %v584, %v582
        %v639 = vpack.c.b16 %v585, %v583
        %v640 = vpack.c.b16 %v588, %v586
        %v641 = vpack.c.b16 %v589, %v587
        %v642 = vpack.c.b16 %v592, %v590
        %v643 = vpack.c.b16 %v593, %v591
        %v644 = vpack.c.b16 %v596, %v594
        %v645 = vpack.c.b16 %v597, %v595
        %v646 = vpack.c.b16 %v600, %v598
        %v647 = vpack.c.b16 %v601, %v599
        %v648 = vpack.c.b16 %v604, %v602
        %v649 = vpack.c.b16 %v605, %v603
        %v650 = vpack.c.b16 %v608, %v606
        %v651 = vpack.c.b16 %v609, %v607
        %v652 = vpack.c.b16 %v612, %v610
        %v653 = vpack.c.b16 %v613, %v611
        %v654 = vpack.c.b16 %v616, %v614
        %v655 = vpack.c.b16 %v617, %v615
        %v656 = vpack.c.b16 %v620, %v618
        %v657 = vpack.c.b16 %v621, %v619
        %v658 = vpack.c.b16 %v624, %v622
        %v659 = vpack.c.b16 %v625, %v623
        %v660 = vpack.c.b16 %v628, %v626
        %v661 = vpack.c.b16 %v629, %v627
        %694 = vmatprep.subr.bf16.mxu0 %v631
        %695 = vmatpush1.bf16.msra.mxu0 %v630
        %696 = vmatprep.subr.bf16.mxu0 %v633
        %697 = vmatpush1.bf16.msra.mxu0 %v632
        %698 = vmatprep.subr.bf16.mxu0 %v635
        %699 = vmatpush1.bf16.msra.mxu0 %v634
        %700 = vmatprep.subr.bf16.mxu0 %v637
        %701 = vmatpush1.bf16.msra.mxu0 %v636
        %702 = vmatprep.subr.bf16.mxu0 %v639
        %703 = vmatpush1.bf16.msra.mxu0 %v638
        %704 = vmatprep.subr.bf16.mxu0 %v641
        %705 = vmatpush1.bf16.msra.mxu0 %v640
        %706 = vmatprep.subr.bf16.mxu0 %v643
        %707 = vmatpush1.bf16.msra.mxu0 %v642
        %708 = vmatprep.subr.bf16.mxu0 %v645
        %709 = vmatpush1.bf16.msra.mxu0 %v644
        %710 = vmatprep.subr.bf16.mxu0 %v647
        %711 = vmatpush1.bf16.msra.mxu0 %v646
        %712 = vmatprep.subr.bf16.mxu0 %v649
        %713 = vmatpush1.bf16.msra.mxu0 %v648
        %714 = vmatprep.subr.bf16.mxu0 %v651
        %715 = vmatpush1.bf16.msra.mxu0 %v650
        %716 = vmatprep.subr.bf16.mxu0 %v653
        %717 = vmatpush1.bf16.msra.mxu0 %v652
        %718 = vmatprep.subr.bf16.mxu0 %v655
        %719 = vmatpush1.bf16.msra.mxu0 %v654
        %720 = vmatprep.subr.bf16.mxu0 %v657
        %721 = vmatpush1.bf16.msra.mxu0 %v656
        %722 = vmatprep.subr.bf16.mxu0 %v659
        %723 = vmatpush1.bf16.msra.mxu0 %v658
        %724 = vmatprep.subr.bf16.mxu0 %v661
        %725 = vmatpush1.bf16.msra.mxu0 %v660
        %726 = vmatprep.mubr.bf16.mxu0 %v489
        %727 = vmatmul.mubr.bf16.gmra.mrb[0].mxu0 %v488
        %v728 = vpop.f32.mrb[0].mxu0
        %v729 = vadd.f32 %v527, %v728
        %v730 = vpop.f32.mrb[0].mxu0
        %v731 = vadd.f32 %v531, %v730
        %v732 = vpop.f32.mrb[0].mxu0
        %v733 = vpop.f32.mrb[0].mxu0
        %734 = vdwg.mxu0
        %v735 = vmax.f32 %v729, 0.0
        %v736 = vmax.f32 %v731, 0.0
        %v737 = vpack.c.bf16 %v735, %v735
        %v738 = vpack.c.bf16 %v736, %v736
        %v739 = vld [vmem:[#allocation7] sm:$0xff]
        %v740 = vld [vmem:[#allocation7 + $0x8] sm:$0xff]
        %v741 = vld [vmem:[#allocation7 + $0x10] sm:$0xff]
        %v742 = vld [vmem:[#allocation7 + $0x18] sm:$0xff]
        %v743 = vld [vmem:[#allocation7 + $0x20] sm:$0xff]
        %v744 = vld [vmem:[#allocation7 + $0x28] sm:$0xff]
        %v745 = vld [vmem:[#allocation7 + $0x30] sm:$0xff]
        %v746 = vld [vmem:[#allocation7 + $0x38] sm:$0xff]
        %v747 = vld [vmem:[#allocation7 + $0x40] sm:$0xff]
        %v748 = vld [vmem:[#allocation7 + $0x48] sm:$0xff]
        %v749 = vld [vmem:[#allocation7 + $0x50] sm:$0xff]
        %v750 = vld [vmem:[#allocation7 + $0x58] sm:$0xff]
        %v751 = vld [vmem:[#allocation7 + $0x60] sm:$0xff]
        %v752 = vld [vmem:[#allocation7 + $0x68] sm:$0xff]
        %v753 = vld [vmem:[#allocation7 + $0x70] sm:$0xff]
        %v754 = vld [vmem:[#allocation7 + $0x78] sm:$0xff]
        %v755 = vld [vmem:[#allocation7 + $0x80] sm:$0xff]
        %v756 = vld [vmem:[#allocation7 + $0x88] sm:$0xff]
        %v757 = vld [vmem:[#allocation7 + $0x90] sm:$0xff]
        %v758 = vld [vmem:[#allocation7 + $0x98] sm:$0xff]
        %v759 = vld [vmem:[#allocation7 + $0xa0] sm:$0xff]
        %v760 = vld [vmem:[#allocation7 + $0xa8] sm:$0xff]
        %v761 = vld [vmem:[#allocation7 + $0xb0] sm:$0xff]
        %v762 = vld [vmem:[#allocation7 + $0xb8] sm:$0xff]
        %v763 = vld [vmem:[#allocation7 + $0xc0] sm:$0xff]
        %v764 = vld [vmem:[#allocation7 + $0xc8] sm:$0xff]
        %v765 = vld [vmem:[#allocation7 + $0xd0] sm:$0xff]
        %v766 = vld [vmem:[#allocation7 + $0xd8] sm:$0xff]
        %v767 = vld [vmem:[#allocation7 + $0xe0] sm:$0xff]
        %v768 = vld [vmem:[#allocation7 + $0xe8] sm:$0xff]
        %v769 = vld [vmem:[#allocation7 + $0xf0] sm:$0xff]
        %v770 = vld [vmem:[#allocation7 + $0xf8] sm:$0xff]
        %v771 = vld [vmem:[%s6] sm:$0x3]
        %v773 = vlaneseq
        %v774 = vshrl.u32 %v773, 7
        %v775 = vsub.s32 0, %v774
        %v776 = vrot.slane %v771, %v775
        %v777 = vlaneseq
        %v778 = vshrl.u32 %v777, 7
        %v779 = vsub.s32 1, %v778
        %v780 = vrot.slane %v771, %v779
        %v815 = vunpack.c.l.b16 %v739
        %v816 = vunpack.c.h.b16 %v739
        %v817 = vunpack.c.l.b16 %v740
        %v818 = vunpack.c.h.b16 %v740
        %v819 = vunpack.c.l.b16 %v741
        %v820 = vunpack.c.h.b16 %v741
        %v821 = vunpack.c.l.b16 %v742
        %v822 = vunpack.c.h.b16 %v742
        %v823 = vunpack.c.l.b16 %v743
        %v824 = vunpack.c.h.b16 %v743
        %v825 = vunpack.c.l.b16 %v744
        %v826 = vunpack.c.h.b16 %v744
        %v827 = vunpack.c.l.b16 %v745
        %v828 = vunpack.c.h.b16 %v745
        %v829 = vunpack.c.l.b16 %v746
        %v830 = vunpack.c.h.b16 %v746
        %v831 = vunpack.c.l.b16 %v747
        %v832 = vunpack.c.h.b16 %v747
        %v833 = vunpack.c.l.b16 %v748
        %v834 = vunpack.c.h.b16 %v748
        %v835 = vunpack.c.l.b16 %v749
        %v836 = vunpack.c.h.b16 %v749
        %v837 = vunpack.c.l.b16 %v750
        %v838 = vunpack.c.h.b16 %v750
        %v839 = vunpack.c.l.b16 %v751
        %v840 = vunpack.c.h.b16 %v751
        %v841 = vunpack.c.l.b16 %v752
        %v842 = vunpack.c.h.b16 %v752
        %v843 = vunpack.c.l.b16 %v753
        %v844 = vunpack.c.h.b16 %v753
        %v845 = vunpack.c.l.b16 %v754
        %v846 = vunpack.c.h.b16 %v754
        %v847 = vunpack.c.l.b16 %v755
        %v848 = vunpack.c.h.b16 %v755
        %v849 = vunpack.c.l.b16 %v756
        %v850 = vunpack.c.h.b16 %v756
        %v851 = vunpack.c.l.b16 %v757
        %v852 = vunpack.c.h.b16 %v757
        %v853 = vunpack.c.l.b16 %v758
        %v854 = vunpack.c.h.b16 %v758
        %v855 = vunpack.c.l.b16 %v759
        %v856 = vunpack.c.h.b16 %v759
        %v857 = vunpack.c.l.b16 %v760
        %v858 = vunpack.c.h.b16 %v760
        %v859 = vunpack.c.l.b16 %v761
        %v860 = vunpack.c.h.b16 %v761
        %v861 = vunpack.c.l.b16 %v762
        %v862 = vunpack.c.h.b16 %v762
        %v863 = vunpack.c.l.b16 %v763
        %v864 = vunpack.c.h.b16 %v763
        %v865 = vunpack.c.l.b16 %v764
        %v866 = vunpack.c.h.b16 %v764
        %v867 = vunpack.c.l.b16 %v765
        %v868 = vunpack.c.h.b16 %v765
        %v869 = vunpack.c.l.b16 %v766
        %v870 = vunpack.c.h.b16 %v766
        %v871 = vunpack.c.l.b16 %v767
        %v872 = vunpack.c.h.b16 %v767
        %v873 = vunpack.c.l.b16 %v768
        %v874 = vunpack.c.h.b16 %v768
        %v875 = vunpack.c.l.b16 %v769
        %v876 = vunpack.c.h.b16 %v769
        %v877 = vunpack.c.l.b16 %v770
        %v878 = vunpack.c.h.b16 %v770
        %v879 = vpack.c.b16 %v817, %v815
        %v880 = vpack.c.b16 %v818, %v816
        %v881 = vpack.c.b16 %v821, %v819
        %v882 = vpack.c.b16 %v822, %v820
        %v883 = vpack.c.b16 %v825, %v823
        %v884 = vpack.c.b16 %v826, %v824
        %v885 = vpack.c.b16 %v829, %v827
        %v886 = vpack.c.b16 %v830, %v828
        %v887 = vpack.c.b16 %v833, %v831
        %v888 = vpack.c.b16 %v834, %v832
        %v889 = vpack.c.b16 %v837, %v835
        %v890 = vpack.c.b16 %v838, %v836
        %v891 = vpack.c.b16 %v841, %v839
        %v892 = vpack.c.b16 %v842, %v840
        %v893 = vpack.c.b16 %v845, %v843
        %v894 = vpack.c.b16 %v846, %v844
        %v895 = vpack.c.b16 %v849, %v847
        %v896 = vpack.c.b16 %v850, %v848
        %v897 = vpack.c.b16 %v853, %v851
        %v898 = vpack.c.b16 %v854, %v852
        %v899 = vpack.c.b16 %v857, %v855
        %v900 = vpack.c.b16 %v858, %v856
        %v901 = vpack.c.b16 %v861, %v859
        %v902 = vpack.c.b16 %v862, %v860
        %v903 = vpack.c.b16 %v865, %v863
        %v904 = vpack.c.b16 %v866, %v864
        %v905 = vpack.c.b16 %v869, %v867
        %v906 = vpack.c.b16 %v870, %v868
        %v907 = vpack.c.b16 %v873, %v871
        %v908 = vpack.c.b16 %v874, %v872
        %v909 = vpack.c.b16 %v877, %v875
        %v910 = vpack.c.b16 %v878, %v876
        %943 = vmatprep.subr.bf16.mxu0 %v880
        %944 = vmatpush1.bf16.msra.mxu0 %v879
        %945 = vmatprep.subr.bf16.mxu0 %v882
        %946 = vmatpush1.bf16.msra.mxu0 %v881
        %947 = vmatprep.subr.bf16.mxu0 %v884
        %948 = vmatpush1.bf16.msra.mxu0 %v883
        %949 = vmatprep.subr.bf16.mxu0 %v886
        %950 = vmatpush1.bf16.msra.mxu0 %v885
        %951 = vmatprep.subr.bf16.mxu0 %v888
        %952 = vmatpush1.bf16.msra.mxu0 %v887
        %953 = vmatprep.subr.bf16.mxu0 %v890
        %954 = vmatpush1.bf16.msra.mxu0 %v889
        %955 = vmatprep.subr.bf16.mxu0 %v892
        %956 = vmatpush1.bf16.msra.mxu0 %v891
        %957 = vmatprep.subr.bf16.mxu0 %v894
        %958 = vmatpush1.bf16.msra.mxu0 %v893
        %959 = vmatprep.subr.bf16.mxu0 %v896
        %960 = vmatpush1.bf16.msra.mxu0 %v895
        %961 = vmatprep.subr.bf16.mxu0 %v898
        %962 = vmatpush1.bf16.msra.mxu0 %v897
        %963 = vmatprep.subr.bf16.mxu0 %v900
        %964 = vmatpush1.bf16.msra.mxu0 %v899
        %965 = vmatprep.subr.bf16.mxu0 %v902
        %966 = vmatpush1.bf16.msra.mxu0 %v901
        %967 = vmatprep.subr.bf16.mxu0 %v904
        %968 = vmatpush1.bf16.msra.mxu0 %v903
        %969 = vmatprep.subr.bf16.mxu0 %v906
        %970 = vmatpush1.bf16.msra.mxu0 %v905
        %971 = vmatprep.subr.bf16.mxu0 %v908
        %972 = vmatpush1.bf16.msra.mxu0 %v907
        %973 = vmatprep.subr.bf16.mxu0 %v910
        %974 = vmatpush1.bf16.msra.mxu0 %v909
        %975 = vmatprep.mubr.bf16.mxu0 %v738
        %976 = vmatmul.mubr.bf16.gmra.mrb[0].mxu0 %v737
        %v977 = vpop.f32.mrb[0].mxu0
        %v978 = vadd.f32 %v776, %v977
        %v979 = vpop.f32.mrb[0].mxu0
        %v980 = vadd.f32 %v780, %v979
        %v981 = vpop.f32.mrb[0].mxu0
        %v982 = vpop.f32.mrb[0].mxu0
        %983 = vdwg.mxu0
        %v984 = vmax.f32 %v978, 0.0
        %v985 = vmax.f32 %v980, 0.0
        %v986 = vpack.c.bf16 %v984, %v984
        %v987 = vpack.c.bf16 %v985, %v985
        %v988 = vld [vmem:[#allocation9] sm:$0xf]
        %v989 = vld [vmem:[#allocation9 + $0x4] sm:$0xf]
        %v990 = vld [vmem:[#allocation9 + $0x8] sm:$0xf]
        %v991 = vld [vmem:[#allocation9 + $0xc] sm:$0xf]
        %v992 = vld [vmem:[#allocation9 + $0x10] sm:$0xf]
        %v993 = vld [vmem:[#allocation9 + $0x14] sm:$0xf]
        %v994 = vld [vmem:[#allocation9 + $0x18] sm:$0xf]
        %v995 = vld [vmem:[#allocation9 + $0x1c] sm:$0xf]
        %v996 = vld [vmem:[#allocation9 + $0x20] sm:$0xf]
        %v997 = vld [vmem:[#allocation9 + $0x24] sm:$0xf]
        %v998 = vld [vmem:[#allocation9 + $0x28] sm:$0xf]
        %v999 = vld [vmem:[#allocation9 + $0x2c] sm:$0xf]
        %v1000 = vld [vmem:[#allocation9 + $0x30] sm:$0xf]
        %v1001 = vld [vmem:[#allocation9 + $0x34] sm:$0xf]
        %v1002 = vld [vmem:[#allocation9 + $0x38] sm:$0xf]
        %v1003 = vld [vmem:[#allocation9 + $0x3c] sm:$0xf]
        %v1004 = vld [vmem:[#allocation9 + $0x40] sm:$0xf]
        %v1005 = vld [vmem:[#allocation9 + $0x44] sm:$0xf]
        %v1006 = vld [vmem:[#allocation9 + $0x48] sm:$0xf]
        %v1007 = vld [vmem:[#allocation9 + $0x4c] sm:$0xf]
        %v1008 = vld [vmem:[#allocation9 + $0x50] sm:$0xf]
        %v1009 = vld [vmem:[#allocation9 + $0x54] sm:$0xf]
        %v1010 = vld [vmem:[#allocation9 + $0x58] sm:$0xf]
        %v1011 = vld [vmem:[#allocation9 + $0x5c] sm:$0xf]
        %v1012 = vld [vmem:[#allocation9 + $0x60] sm:$0xf]
        %v1013 = vld [vmem:[#allocation9 + $0x64] sm:$0xf]
        %v1014 = vld [vmem:[#allocation9 + $0x68] sm:$0xf]
        %v1015 = vld [vmem:[#allocation9 + $0x6c] sm:$0xf]
        %v1016 = vld [vmem:[#allocation9 + $0x70] sm:$0xf]
        %v1017 = vld [vmem:[#allocation9 + $0x74] sm:$0xf]
        %v1018 = vld [vmem:[#allocation9 + $0x78] sm:$0xf]
        %v1019 = vld [vmem:[#allocation9 + $0x7c] sm:$0xf]
        %v1020 = vld [vmem:[%s8] sm:$0x1]
        %v1022 = vlaneseq
        %v1023 = vshrl.u32 %v1022, 7
        %v1024 = vsub.s32 0, %v1023
        %v1025 = vrot.slane %v1020, %v1024
        %v1059 = vunpack.c.l.b16 %v988
        %v1060 = vunpack.c.l.b16 %v989
        %v1061 = vunpack.c.l.b16 %v990
        %v1062 = vunpack.c.l.b16 %v991
        %v1063 = vunpack.c.l.b16 %v992
        %v1064 = vunpack.c.l.b16 %v993
        %v1065 = vunpack.c.l.b16 %v994
        %v1066 = vunpack.c.l.b16 %v995
        %v1067 = vunpack.c.l.b16 %v996
        %v1068 = vunpack.c.l.b16 %v997
        %v1069 = vunpack.c.l.b16 %v998
        %v1070 = vunpack.c.l.b16 %v999
        %v1071 = vunpack.c.l.b16 %v1000
        %v1072 = vunpack.c.l.b16 %v1001
        %v1073 = vunpack.c.l.b16 %v1002
        %v1074 = vunpack.c.l.b16 %v1003
        %v1075 = vunpack.c.l.b16 %v1004
        %v1076 = vunpack.c.l.b16 %v1005
        %v1077 = vunpack.c.l.b16 %v1006
        %v1078 = vunpack.c.l.b16 %v1007
        %v1079 = vunpack.c.l.b16 %v1008
        %v1080 = vunpack.c.l.b16 %v1009
        %v1081 = vunpack.c.l.b16 %v1010
        %v1082 = vunpack.c.l.b16 %v1011
        %v1083 = vunpack.c.l.b16 %v1012
        %v1084 = vunpack.c.l.b16 %v1013
        %v1085 = vunpack.c.l.b16 %v1014
        %v1086 = vunpack.c.l.b16 %v1015
        %v1087 = vunpack.c.l.b16 %v1016
        %v1088 = vunpack.c.l.b16 %v1017
        %v1089 = vunpack.c.l.b16 %v1018
        %v1090 = vunpack.c.l.b16 %v1019
        %v1091 = vpack.c.b16 %v1060, %v1059
        %v1092 = vpack.c.b16 %v1062, %v1061
        %v1093 = vpack.c.b16 %v1064, %v1063
        %v1094 = vpack.c.b16 %v1066, %v1065
        %v1095 = vpack.c.b16 %v1068, %v1067
        %v1096 = vpack.c.b16 %v1070, %v1069
        %v1097 = vpack.c.b16 %v1072, %v1071
        %v1098 = vpack.c.b16 %v1074, %v1073
        %v1099 = vpack.c.b16 %v1076, %v1075
        %v1100 = vpack.c.b16 %v1078, %v1077
        %v1101 = vpack.c.b16 %v1080, %v1079
        %v1102 = vpack.c.b16 %v1082, %v1081
        %v1103 = vpack.c.b16 %v1084, %v1083
        %v1104 = vpack.c.b16 %v1086, %v1085
        %v1105 = vpack.c.b16 %v1088, %v1087
        %v1106 = vpack.c.b16 %v1090, %v1089
        %1123 = vmatprep.subr.bf16.mxu0 0
        %1124 = vmatpush1.bf16.msra.mxu0 %v1091
        %1125 = vmatprep.subr.bf16.mxu0 0
        %1126 = vmatpush1.bf16.msra.mxu0 %v1092
        %1127 = vmatprep.subr.bf16.mxu0 0
        %1128 = vmatpush1.bf16.msra.mxu0 %v1093
        %1129 = vmatprep.subr.bf16.mxu0 0
        %1130 = vmatpush1.bf16.msra.mxu0 %v1094
        %1131 = vmatprep.subr.bf16.mxu0 0
        %1132 = vmatpush1.bf16.msra.mxu0 %v1095
        %1133 = vmatprep.subr.bf16.mxu0 0
        %1134 = vmatpush1.bf16.msra.mxu0 %v1096
        %1135 = vmatprep.subr.bf16.mxu0 0
        %1136 = vmatpush1.bf16.msra.mxu0 %v1097
        %1137 = vmatprep.subr.bf16.mxu0 0
        %1138 = vmatpush1.bf16.msra.mxu0 %v1098
        %1139 = vmatprep.subr.bf16.mxu0 0
        %1140 = vmatpush1.bf16.msra.mxu0 %v1099
        %1141 = vmatprep.subr.bf16.mxu0 0
        %1142 = vmatpush1.bf16.msra.mxu0 %v1100
        %1143 = vmatprep.subr.bf16.mxu0 0
        %1144 = vmatpush1.bf16.msra.mxu0 %v1101
        %1145 = vmatprep.subr.bf16.mxu0 0
        %1146 = vmatpush1.bf16.msra.mxu0 %v1102
        %1147 = vmatprep.subr.bf16.mxu0 0
        %1148 = vmatpush1.bf16.msra.mxu0 %v1103
        %1149 = vmatprep.subr.bf16.mxu0 0
        %1150 = vmatpush1.bf16.msra.mxu0 %v1104
        %1151 = vmatprep.subr.bf16.mxu0 0
        %1152 = vmatpush1.bf16.msra.mxu0 %v1105
        %1153 = vmatprep.subr.bf16.mxu0 0
        %1154 = vmatpush1.bf16.msra.mxu0 %v1106
        %1155 = vmatprep.mubr.bf16.mxu0 %v987
        %1156 = vmatmul.mubr.bf16.gmra.mrb[0].mxu0 %v986
        %v1157 = vpop.f32.mrb[0].mxu0
        %v1158 = vadd.f32 %v1025, %v1157
        %v1159 = vpop.f32.mrb[0].mxu0
        %v1160 = vpop.f32.mrb[0].mxu0
        %v1161 = vpop.f32.mrb[0].mxu0
        %1162 = vdwg.mxu0
        %vm1163 = vcmask 31744
        %1164 = vst.msk [vmem:[%s405] sm:$0xff] %vm1163, %v1158
        %p1165 = scmp.lt.s32.totalorder %s25, 1
        %s1166 = scalar_select %p1165, %s25, 1
        %s1167 = smul.addr %s1166, 8
        %s1168 = scalar_lea.vmem %s9, %s1167
        // Predicated region
        $region77: #{tpu_custom_call.1} parent=55 // pred_check
          %p1169 = pneg %p237
        $region78: #{tpu_custom_call.1} parent=55 // pred_check_branch
          %1171 = sbr.rel (%p1169) target = $region80
        $region79: #{tpu_custom_call.1} parent=55 // pred_region
          _
        $region80: #{tpu_custom_call.1} parent=55 // pred_fallthru
          _
      $region56: #{tpu_custom_call.1} parent=5 // pred_fallthru
        _
      %p1172 = scmp.le.s32.totalorder 2, %s20
      // Predicated region
      $region81: #{tpu_custom_call.1} parent=5 // pred_check
        %p1173 = pneg %p1172
      $region82: #{tpu_custom_call.1} parent=5 // pred_check_branch
        %1175 = sbr.rel (%p1173) target = $region84
      $region83: #{tpu_custom_call.1} parent=5 // pred_region
        %s1176 = ssub.s32 %s20, 2
        // Predicated region
        $region85: #{tpu_custom_call.1} parent=83 // pred_check
          %p1177 = pneg %p243
        $region86: #{tpu_custom_call.1} parent=83 // pred_check_branch
          %1179 = sbr.rel (%p1177) target = $region88
        $region87: #{tpu_custom_call.1} parent=83 // pred_region
          %p1180 = scmp.lt.s32.totalorder %s26, 1
          %s1181 = scalar_select %p1180, %s26, 1
          %s1182 = smul.addr %s1181, 8
          %s1183 = scalar_lea.vmem %s9, %s1182
        $region88: #{tpu_custom_call.1} parent=83 // pred_fallthru
          _
      $region84: #{tpu_custom_call.1} parent=5 // pred_fallthru
        _
    $region6: #{tpu_custom_call.1} parent=1 // loop_footer
      %s24 = sadd.s32 1, %s20
    $region7: #{tpu_custom_call.1} parent=1 // loop_footer_branch
      %19 = sbr.rel target = $region3
    $region8: #{tpu_custom_call.1} parent=1 // loop_exit
      _
    %1184 = vsyncpa [#allocation3], 1
    %s1185 = scalar_lea.sflag [#allocation3], 1
    %1186 = vsyncpa %s1185, 1
    %1187 = vsyncpa [#allocation5], 1
    %1188 = vsyncpa [#allocation8], 1

</llo_original>
